<compile_context>
chip_gen: v7x
topology: tpu7x:2x2x1
jax: 0.10.0
libtpu: 0.0.40
codegen_flags: <defaults>
</compile_context>

<pallas_src>
import functools
import math

import jax
import jax.numpy as jnp
from jax import lax
from jax.experimental import pallas as pl
from jax.experimental.pallas import tpu as pltpu

_EPS = 1e-5
_VMEM_LIMIT_BYTES = 32 * 1024 * 1024   # safe default scoped VMEM on v5e/v6e/v7x
_TARGET_TILE_BYTES = 2 * 1024 * 1024   # ~roofline knee for streaming kernels
_MIN_GRID_STEPS = 8                    # keep megacore + pipeline overlap busy


def _round_down(v, m):
    return (v // m) * m


# ----------------------------------------------------------------------------
# Channel-axis kernel: x is (B, C, S); normalize over C per (batch, spatial) pos.
# Lane-dense, transpose-free path for midet's NCHW usage (to_3d -> LN -> to_4d).
# ----------------------------------------------------------------------------
def _bf_ln_channel_kernel(x_ref, w_ref, o_ref):
    # x_ref: (1, C, TILE_S), w_ref: (1, C, 1), o_ref: (1, C, TILE_S)
    xn = x_ref[...]
    x32 = xn.astype(jnp.float32)
    inv_c = 1.0 / x_ref.shape[1]
    s1 = jnp.sum(x32, axis=1, keepdims=True)             # (1, 1, T) sublane reduce (XLU)
    s2 = jnp.sum(x32 * x32, axis=1, keepdims=True)       # single pass: E[x^2]
    mean = s1 * inv_c
    var = jnp.maximum(s2 * inv_c - mean * mean, 0.0)
    inv = lax.rsqrt(var + _EPS)
    o_ref[...] = (xn * inv.astype(xn.dtype) * w_ref[...].astype(xn.dtype)).astype(o_ref.dtype)


def biasfree_layernorm_channels(x_bcs, weight, *, target_tile_bytes=_TARGET_TILE_BYTES):
    """BiasFree LayerNorm over the channel axis of a (B, C, S) array."""
    B, C, S = x_bcs.shape
    itemsize = jnp.dtype(x_bcs.dtype).itemsize

    if S <= 128:
        tile_s = S                                    # full last dim (allowed by Mosaic)
    else:
        tile_s = max(128, _round_down(target_tile_bytes // max(1, C * itemsize), 128))
        tile_s = min(tile_s, max(128, _round_down(S, 128)))
        # Ensure enough grid steps for megacore sharding / pipeline overlap.
        if B * pl.cdiv(S, tile_s) < _MIN_GRID_STEPS:
            want_s = pl.cdiv(_MIN_GRID_STEPS, B)
            tile_s = min(tile_s, max(128, _round_down(S // want_s, 128)))

    grid = (B, pl.cdiv(S, tile_s))                    # partial trailing lane block is OK
    w3 = weight.reshape(1, C, 1)

    return pl.pallas_call(
        _bf_ln_channel_kernel,
        out_shape=jax.ShapeDtypeStruct((B, C, S), x_bcs.dtype),
        grid_spec=pltpu.PrefetchScalarGridSpec(
            num_scalar_prefetch=0,
            grid=grid,
            in_specs=[
                pl.BlockSpec((1, C, tile_s), lambda b, s: (b, 0, s)),
                pl.BlockSpec((1, C, 1), lambda b, s: (0, 0, 0)),   # resident weight block
            ],
            out_specs=pl.BlockSpec((1, C, tile_s), lambda b, s: (b, 0, s)),
        ),
        compiler_params=pltpu.CompilerParams(
            dimension_semantics=("parallel", "parallel"),
            vmem_limit_bytes=_VMEM_LIMIT_BYTES,
        ),
    )(x_bcs, w3)


def biasfree_layernorm_nchw(x_nchw, weight, **kw):
    """midet usage: to_3d -> LayerNorm(C) -> to_4d, with zero XLA transposes/pads."""
    B, C, H, W = x_nchw.shape
    y = biasfree_layernorm_channels(x_nchw.reshape(B, C, H * W), weight, **kw)
    return y.reshape(B, C, H, W)


# ----------------------------------------------------------------------------
# Raw-module semantics: normalize over the LAST dim of an arbitrary (..., C) input.
# ----------------------------------------------------------------------------
def _bf_ln_lastdim_kernel(x_ref, w_ref, o_ref):
    # x_ref: (TILE_R, C), w_ref: (1, C)
    xn = x_ref[...]
    x32 = xn.astype(jnp.float32)
    inv_c = 1.0 / x_ref.shape[-1]
    s1 = jnp.sum(x32, axis=-1, keepdims=True)
    s2 = jnp.sum(x32 * x32, axis=-1, keepdims=True)
    mean = s1 * inv_c
    var = jnp.maximum(s2 * inv_c - mean * mean, 0.0)
    inv = lax.rsqrt(var + _EPS)
    o_ref[...] = (xn * inv.astype(xn.dtype) * w_ref[...].astype(xn.dtype)).astype(o_ref.dtype)


def _bf_ln_lastdim_packed_kernel(x_ref, w_ref, m_ref, mt_ref, o_ref, *, group_size):
    # x_ref: (TILE_R, P*C) with P logical rows (groups of C lanes) per physical row.
    # m_ref: (P*C, P) 0/1 block-diagonal grouping matrix, mt_ref = m_ref.T.
    xn = x_ref[...]
    x32 = xn.astype(jnp.float32)
    m = m_ref[...]
    s1 = jnp.dot(x32, m, preferred_element_type=jnp.float32)        # (TILE_R, P) group sums
    s2 = jnp.dot(x32 * x32, m, preferred_element_type=jnp.float32)  # (TILE_R, P)
    inv_c = 1.0 / group_size
    mean = s1 * inv_c
    var = jnp.maximum(s2 * inv_c - mean * mean, 0.0)
    inv = lax.rsqrt(var + _EPS)
    inv_b = jnp.dot(inv, mt_ref[...], preferred_element_type=jnp.float32)  # (TILE_R, P*C)
    o_ref[...] = (xn * inv_b.astype(xn.dtype) * w_ref[...].astype(xn.dtype)).astype(o_ref.dtype)


def _pick_tile_rows(nrows, width, itemsize, target_bytes):
    if nrows <= 8:
        return nrows
    t = max(8, _round_down(target_bytes // max(1, width * itemsize), 8))
    return min(t, max(8, _round_down(nrows, 8)))


def biasfree_layernorm(x, weight, *, target_tile_bytes=_TARGET_TILE_BYTES):
    """Faithful last-dim BiasFree LayerNorm for any (..., C) input.
    For NCHW feature maps prefer biasfree_layernorm_nchw (channel-axis kernel)."""
    orig_shape = x.shape
    C = orig_shape[-1]
    rows = math.prod(orig_shape[:-1]) if len(orig_shape) > 1 else 1
    x2 = x.reshape(rows, C)
    itemsize = jnp.dtype(x.dtype).itemsize

    pack = 128 // C if (C < 128 and 128 % C == 0) else 1

    if pack > 1 and rows % pack == 0:
        # Lane-dense path: fold `pack` logical rows per physical row (pure reshape).
        rows_p = rows // pack
        lanes = pack * C
        x2p = x2.reshape(rows_p, lanes)
        w2 = jnp.tile(weight.reshape(1, C), (1, pack))
        m = (jnp.arange(lanes)[:, None] // C == jnp.arange(pack)[None, :]).astype(jnp.float32)
        mt = m.T
        tile_r = _pick_tile_rows(rows_p, lanes, itemsize, target_tile_bytes)
        grid = (pl.cdiv(rows_p, tile_r),)
        out = pl.pallas_call(
            functools.partial(_bf_ln_lastdim_packed_kernel, group_size=C),
            out_shape=jax.ShapeDtypeStruct((rows_p, lanes), x.dtype),
            grid_spec=pltpu.PrefetchScalarGridSpec(
                num_scalar_prefetch=0,
                grid=grid,
                in_specs=[
                    pl.BlockSpec((tile_r, lanes), lambda i: (i, 0)),
                    pl.BlockSpec((1, lanes), lambda i: (0, 0)),
                    pl.BlockSpec((lanes, pack), lambda i: (0, 0)),
                    pl.BlockSpec((pack, lanes), lambda i: (0, 0)),
                ],
                out_specs=pl.BlockSpec((tile_r, lanes), lambda i: (i, 0)),
            ),
            compiler_params=pltpu.CompilerParams(
                dimension_semantics=("parallel",),
                vmem_limit_bytes=_VMEM_LIMIT_BYTES,
            ),
        )(x2p, w2, m, mt)
        return out.reshape(orig_shape)

    # Generic fallback (C >= 128, or C does not divide 128, or rows not a pack multiple).
    w2 = weight.reshape(1, C)
    tile_r = _pick_tile_rows(rows, C, itemsize, target_tile_bytes)
    grid = (pl.cdiv(rows, tile_r),)
    out = pl.pallas_call(
        _bf_ln_lastdim_kernel,
        out_shape=jax.ShapeDtypeStruct((rows, C), x.dtype),
        grid_spec=pltpu.PrefetchScalarGridSpec(
            num_scalar_prefetch=0,
            grid=grid,
            in_specs=[
                pl.BlockSpec((tile_r, C), lambda i: (i, 0)),
                pl.BlockSpec((1, C), lambda i: (0, 0)),
            ],
            out_specs=pl.BlockSpec((tile_r, C), lambda i: (i, 0)),
        ),
        compiler_params=pltpu.CompilerParams(
            dimension_semantics=("parallel",),
            vmem_limit_bytes=_VMEM_LIMIT_BYTES,
        ),
    )(x2, w2)
    return out.reshape(orig_shape)


# ----------------------------------------------------------------------------
# Pure-JAX references mirroring the PyTorch forward.
# ----------------------------------------------------------------------------
def _reference_channels(x_bcs, weight):
    xf = x_bcs.astype(jnp.float32)
    var = jnp.var(xf, axis=1, keepdims=True)                 # biased (unbiased=False)
    y = xf / jnp.sqrt(var + _EPS) * weight.reshape(1, -1, 1)
    return y.astype(x_bcs.dtype)


def _reference_lastdim(x, weight):
    xf = x.astype(jnp.float32)
    var = jnp.var(xf, axis=-1, keepdims=True)
    return (xf / jnp.sqrt(var + _EPS) * weight).astype(x.dtype)


if __name__ == "__main__":
    key = jax.random.PRNGKey(0)
    k1, k2, k3, k4, k5 = jax.random.split(key, 5)

    C = 32
    # Module init is torch.ones; use a deterministic non-trivial (trained-like) weight
    # so the weight multiply is actually exercised.
    weight = 1.0 + 0.01 * jnp.arange(C, dtype=jnp.float32)

    # 1) midet-style NCHW feature map: normalize over channels per spatial position.
    B, H, W = 2, 16, 16
    x = jax.random.normal(k1, (B, C, H, W), dtype=jnp.float32)
    out = jax.block_until_ready(biasfree_layernorm_nchw(x, weight))
    ref = _reference_channels(x.reshape(B, C, H * W), weight).reshape(B, C, H, W)
    assert out.shape == (B, C, H, W)
    assert jnp.allclose(out, ref, atol=1e-4, rtol=1e-4)

    # 2) Small spatial size (< 128 lanes): full-dim lane block.
    x_odd = jax.random.normal(k2, (2, C, 9, 9), dtype=jnp.float32)
    out_odd = jax.block_until_ready(biasfree_layernorm_nchw(x_odd, weight))
    ref_odd = _reference_channels(x_odd.reshape(2, C, 81), weight).reshape(2, C, 9, 9)
    assert jnp.allclose(out_odd, ref_odd, atol=1e-4, rtol=1e-4)

    # 3) Spatial size > 128 but not a multiple of 128: partial trailing lane block.
    x_part = jax.random.normal(k3, (2, C, 12, 12), dtype=jnp.float32)
    out_part = jax.block_until_ready(biasfree_layernorm_nchw(x_part, weight))
    ref_part = _reference_channels(x_part.reshape(2, C, 144), weight).reshape(2, C, 12, 12)
    assert jnp.allclose(out_part, ref_part, atol=1e-4, rtol=1e-4)

    # 4) Raw-module semantics, small hidden dim -> lane-dense packed path (pack=4).
    x3 = jax.random.normal(k4, (2, 8, C), dtype=jnp.float32)
    out3 = jax.block_until_ready(biasfree_layernorm(x3, weight))
    ref3 = _reference_lastdim(x3, weight)
    assert jnp.allclose(out3, ref3, atol=1e-4, rtol=1e-4)

    # 5) Raw-module semantics, generic fallback path with a partial trailing row block.
    C2 = 48
    weight2 = 1.0 + 0.01 * jnp.arange(C2, dtype=jnp.float32)
    x4 = jax.random.normal(k5, (4, 5, C2), dtype=jnp.float32)
    out4 = jax.block_until_ready(biasfree_layernorm(x4, weight2))
    ref4 = _reference_lastdim(x4, weight2)
    assert jnp.allclose(out4, ref4, atol=1e-4, rtol=1e-4)

    print("KERNEL_OK")
</pallas_src>

<mosaic_0001>
module attributes {stable_mosaic.version = 11 : i64} {
  func.func @_bf_ln_channel_kernel(%arg0: i32, %arg1: i32, %arg2: memref<1x32x128xf32, #tpu.memory_space<vmem>>, %arg3: memref<1x32x1xf32, #tpu.memory_space<vmem>>, %arg4: memref<1x32x128xf32, #tpu.memory_space<vmem>>) attributes {dimension_semantics = [#tpu.dimension_semantics<parallel>, #tpu.dimension_semantics<parallel>], iteration_bounds = array<i64: 2, 2>, scalar_prefetch = 0 : i64, scratch_operands = 0 : i64, tpu.core_type = #tpu.core_type<tc>, window_params = [{transform_indices = @transform_0, window_bounds = array<i64: 1, 32, 128>}, {pipeline_mode = #tpu.pipeline_mode<synchronous>, transform_indices = @transform_1, window_bounds = array<i64: 1, 32, 1>}, {transform_indices = @transform_2, window_bounds = array<i64: 1, 32, 128>}]} {
    %c0 = arith.constant 0 : index
    %c0_0 = arith.constant 0 : index
    %c0_1 = arith.constant 0 : index
    %0 = vector.load %arg2[%c0, %c0_0, %c0_1] : memref<1x32x128xf32, #tpu.memory_space<vmem>>, vector<1x32x128xf32>
    %cst = arith.constant dense<0.000000e+00> : vector<1x128xf32>
    %1 = vector.multi_reduction <add>, %0, %cst [1] : vector<1x32x128xf32> to vector<1x128xf32>
    %2 = vector.shape_cast %1 : vector<1x128xf32> to vector<1x1x128xf32>
    %3 = arith.mulf %0, %0 : vector<1x32x128xf32>
    %cst_2 = arith.constant dense<0.000000e+00> : vector<1x128xf32>
    %4 = vector.multi_reduction <add>, %3, %cst_2 [1] : vector<1x32x128xf32> to vector<1x128xf32>
    %5 = vector.shape_cast %4 : vector<1x128xf32> to vector<1x1x128xf32>
    %cst_3 = arith.constant 3.125000e-02 : f32
    %6 = vector.broadcast %cst_3 : f32 to vector<1x1x128xf32>
    %7 = arith.mulf %2, %6 : vector<1x1x128xf32>
    %cst_4 = arith.constant 3.125000e-02 : f32
    %8 = vector.broadcast %cst_4 : f32 to vector<1x1x128xf32>
    %9 = arith.mulf %5, %8 : vector<1x1x128xf32>
    %10 = arith.mulf %7, %7 : vector<1x1x128xf32>
    %11 = arith.subf %9, %10 : vector<1x1x128xf32>
    %cst_5 = arith.constant 0.000000e+00 : f32
    %12 = vector.broadcast %cst_5 : f32 to vector<1x1x128xf32>
    %13 = arith.maximumf %11, %12 : vector<1x1x128xf32>
    %cst_6 = arith.constant 9.99999974E-6 : f32
    %14 = vector.broadcast %cst_6 : f32 to vector<1x1x128xf32>
    %15 = arith.addf %13, %14 : vector<1x1x128xf32>
    %16 = math.rsqrt %15 : vector<1x1x128xf32>
    %17 = vector.broadcast %16 : vector<1x1x128xf32> to vector<1x32x128xf32>
    %18 = arith.mulf %0, %17 : vector<1x32x128xf32>
    %c0_7 = arith.constant 0 : index
    %c0_8 = arith.constant 0 : index
    %c0_9 = arith.constant 0 : index
    %19 = vector.load %arg3[%c0_7, %c0_8, %c0_9] : memref<1x32x1xf32, #tpu.memory_space<vmem>>, vector<1x32x1xf32>
    %20 = vector.broadcast %19 : vector<1x32x1xf32> to vector<1x32x128xf32>
    %21 = arith.mulf %18, %20 : vector<1x32x128xf32>
    %c0_10 = arith.constant 0 : index
    %c0_11 = arith.constant 0 : index
    %c0_12 = arith.constant 0 : index
    %22 = vector.load %arg4[%c0_10, %c0_11, %c0_12] : memref<1x32x128xf32, #tpu.memory_space<vmem>>, vector<1x32x128xf32>
    tpu.vector_store %arg4[%c0_10, %c0_11, %c0_12], %21 {strides = array<i32>} : memref<1x32x128xf32, #tpu.memory_space<vmem>>, vector<1x32x128xf32>,
    return
  }
  func.func @transform_0(%arg0: i32, %arg1: i32) -> (i32, i32, i32) {
    %c0_i32 = arith.constant 0 : i32
    %c0_i32_0 = arith.constant 0 : i32
    return %arg0, %c0_i32, %arg1 : i32, i32, i32
  }
  func.func @transform_1(%arg0: i32, %arg1: i32) -> (i32, i32, i32) {
    %c0_i32 = arith.constant 0 : i32
    %c0_i32_0 = arith.constant 0 : i32
    %c0_i32_1 = arith.constant 0 : i32
    %c0_i32_2 = arith.constant 0 : i32
    return %c0_i32, %c0_i32_0, %c0_i32_1 : i32, i32, i32
  }
  func.func @transform_2(%arg0: i32, %arg1: i32) -> (i32, i32, i32) {
    %c0_i32 = arith.constant 0 : i32
    %c0_i32_0 = arith.constant 0 : i32
    return %arg0, %c0_i32, %arg1 : i32, i32, i32
  }
}

</mosaic_0001>

<llo_original>
// kernel: tpu_custom_call.1
$region0: #{tpu_custom_call.1}
  #allocation0 [shape = 'u32[]', space=smem, size = 0x4, offset = 0x4, fixed_abs, tag = 'smem constant byte address 0x4 - core index']
  #allocation1 [shape = 'u32[144,128]{1,0:T(1,128)}', space=vmem, size = 0x12000, scoped, tag = 'internal scratch']
  %s0 = inlined_call_operand.hbm [shape: f32[2,32,256], index: 0, kind: input, shape index: {}]
  %s1 = inlined_call_operand.vmem [shape: f32[1,32,1], index: 1, kind: input, shape index: {}]
  %s2 = inlined_call_operand.hbm [shape: f32[2,32,256], index: 2, kind: output, shape index: {}]
  %s3 = sld [smem:[#allocation0]]
  $region45: #{tpu_custom_call.1} parent=0
    _
  %s5 = ssub.s32 1, %s3
  %s6 = scalar_select 0, %s5, %s3
  $region1: #{tpu_custom_call.1} parent=0
    #allocation2 [shape = 'u8[32768]{0}', space=vmem, size = 0x8000, scoped, tag = 'input window, operand 0']
    #allocation3 [shape = 's32[2]{0}', space=sflag, size = 0x8, scoped, tag = 'scoped memory for tpu_custom_call.1']
    #allocation4 [shape = 's32[2]{0}', space=sflag, size = 0x8, scoped, tag = 'scoped memory for tpu_custom_call.1']
    #allocation5 [shape = 'u8[32768]{0}', space=vmem, size = 0x8000, scoped, tag = 'output window, operand 0']
    %7 = vsyncpa [#allocation3], 0
    %s8 = scalar_lea.sflag [#allocation3], 1
    %9 = vsyncpa %s8, 0
    %10 = vsyncpa [#allocation4], 0
    %s11 = scalar_lea.sflag [#allocation4], 1
    %12 = vsyncpa %s11, 0
    loop: start=0, step=1, limit=6
    $region2: #{tpu_custom_call.1} parent=1 // loop_pre_header
      _
    $region3: #{tpu_custom_call.1} parent=1 // loop_header
      %s14 = sphi 0, %s18
      %p15 = scmp.ge.s32.totalorder %s14, 6
      %s21 = sphi 0, %s33
      %s22 = sphi 0, %s29
      %s23 = sphi 0, %s21
      %s24 = sphi 0, %s22
      %s25 = sphi 0, %s23
      %s26 = sphi 0, %s24
      %s38 = sphi 0, %s40
      %s41 = sphi 0, %s38
      %s42 = sphi 0, %s41
      %s58 = sphi 0, %s42
      %s62 = sphi 0, %s62
      %s64 = sphi 0, %s62
      %s65 = sphi 0, %s64
      %s79 = sphi 0, %s65
      %s87 = sphi 0, %s89
      %s90 = sphi 0, %s87
      %s91 = sphi 0, %s90
      %s107 = sphi 0, %s91
    $region4: #{tpu_custom_call.1} parent=1 // loop_header_branch
      %17 = sbr.rel (%p15) target = $region8
    $region5: #{tpu_custom_call.1} parent=1 // loop_body
      %s19 = ssub.s32 %s14, 1
      %s20 = ssub.s32 %s14, 2
      %s27 = sadd.s32 1, %s22
      %p28 = scmp.ge.s32.totalorder %s27, 2
      %s29 = scalar_select %p28, 0, %s27
      %s30 = sadd.s32 1, %s21
      %s31 = scalar_select %p28, %s30, %s21
      %p32 = scmp.ge.s32.totalorder %s31, 2
      %s33 = scalar_select %p32, 0, %s31
      %s34 = ssub.s32 %s21, %s33
      %s35 = ssub.s32 %s22, %s29
      %s36 = sor.u32 %s34, %s35
      %p37 = scmp.eq.s32.totalorder %s36, 0
      %s39 = sadd.s32 %s38, 1
      %s40 = scalar_select %p37, %s38, %s39
      %p43 = pneg %p37
      %p44 = scmp.eq.s32.totalorder %s14, 3
      %p45 = por %p43, %p44
      %p46 = scmp.ne.s32.totalorder %s38, %s41
      %p47 = scmp.eq.s32.totalorder %s14, 0
      %p48 = por %p46, %p47
      %p49 = scmp.ne.s32.totalorder %s38, %s41
      %p50 = scmp.eq.s32.totalorder %s19, 3
      %p51 = por %p49, %p50
      %p52 = scmp.ne.s32.totalorder %s41, %s42
      %p53 = scmp.eq.s32.totalorder %s19, 0
      %p54 = por %p52, %p53
      %p55 = scmp.ne.s32.totalorder %s41, %s42
      %p56 = scmp.eq.s32.totalorder %s20, 3
      %p57 = por %p55, %p56
      %p59 = scmp.ne.s32.totalorder %s42, %s58
      %p60 = scmp.eq.s32.totalorder %s20, 0
      %p61 = por %p59, %p60
      %s63 = sadd.s32 %s62, 1
      %p66 = scmp.eq.s32.totalorder %s14, 3
      %p67 = scmp.ne.s32.totalorder %s62, %s64
      %p68 = scmp.eq.s32.totalorder %s14, 0
      %p69 = por %p67, %p68
      %p70 = scmp.ne.s32.totalorder %s62, %s64
      %p71 = scmp.eq.s32.totalorder %s19, 3
      %p72 = por %p70, %p71
      %p73 = scmp.ne.s32.totalorder %s64, %s65
      %p74 = scmp.eq.s32.totalorder %s19, 0
      %p75 = por %p73, %p74
      %p76 = scmp.ne.s32.totalorder %s64, %s65
      %p77 = scmp.eq.s32.totalorder %s20, 3
      %p78 = por %p76, %p77
      %p80 = scmp.ne.s32.totalorder %s65, %s79
      %p81 = scmp.eq.s32.totalorder %s20, 0
      %p82 = por %p80, %p81
      %s83 = ssub.s32 %s21, %s33
      %s84 = ssub.s32 %s22, %s29
      %s85 = sor.u32 %s83, %s84
      %p86 = scmp.eq.s32.totalorder %s85, 0
      %s88 = sadd.s32 %s87, 1
      %s89 = scalar_select %p86, %s87, %s88
      %p92 = pneg %p86
      %p93 = scmp.eq.s32.totalorder %s14, 3
      %p94 = por %p92, %p93
      %p95 = scmp.ne.s32.totalorder %s87, %s90
      %p96 = scmp.eq.s32.totalorder %s14, 0
      %p97 = por %p95, %p96
      %p98 = scmp.ne.s32.totalorder %s87, %s90
      %p99 = scmp.eq.s32.totalorder %s19, 3
      %p100 = por %p98, %p99
      %p101 = scmp.ne.s32.totalorder %s90, %s91
      %p102 = scmp.eq.s32.totalorder %s19, 0
      %p103 = por %p101, %p102
      %p104 = scmp.ne.s32.totalorder %s90, %s91
      %p105 = scmp.eq.s32.totalorder %s20, 3
      %p106 = por %p104, %p105
      %p108 = scmp.ne.s32.totalorder %s91, %s107
      %p109 = scmp.eq.s32.totalorder %s20, 0
      %p110 = por %p108, %p109
      %p111 = scmp.le.s32.totalorder 1, %s14
      %p112 = scmp.lt.s32.totalorder %s14, 5
      %p113 = pnand %p111, %p112
      %p114 = pneg %p113
      // Predicated region
      $region9: #{tpu_custom_call.1} parent=5 // pred_check
        _
      $region10: #{tpu_custom_call.1} parent=5 // pred_check_branch
        %116 = sbr.rel (%p113) target = $region12
      $region11: #{tpu_custom_call.1} parent=5 // pred_region
        %s117 = ssub.s32 %s14, 1
        // Predicated region
        $region13: #{tpu_custom_call.1} parent=11 // pred_check
          %p118 = pneg %p75
        $region14: #{tpu_custom_call.1} parent=11 // pred_check_branch
          %120 = sbr.rel (%p118) target = $region16
        $region15: #{tpu_custom_call.1} parent=11 // pred_region
          _
        $region16: #{tpu_custom_call.1} parent=11 // pred_fallthru
          _
      $region12: #{tpu_custom_call.1} parent=5 // pred_fallthru
        _
      %p121 = scmp.lt.s32.totalorder %s14, 4
      // Predicated region
      $region17: #{tpu_custom_call.1} parent=5 // pred_check
        %p122 = pneg %p121
      $region18: #{tpu_custom_call.1} parent=5 // pred_check_branch
        %124 = sbr.rel (%p122) target = $region20
      $region19: #{tpu_custom_call.1} parent=5 // pred_region
        // Predicated region
        $region21: #{tpu_custom_call.1} parent=19 // pred_check
          %p125 = pneg %p48
        $region22: #{tpu_custom_call.1} parent=19 // pred_check_branch
          %127 = sbr.rel (%p125) target = $region24
        $region23: #{tpu_custom_call.1} parent=19 // pred_region
          %s128 = sand.u32 %s38, 1
          %s129 = scalar_lea.sflag [#allocation3], %s128
          %s130 = sand.u32 %s38, 1
          %s131 = smul.addr %s130, 32
          %s132 = scalar_lea.vmem [#allocation2], %s131
          %s134 = ssub.s32 512, 512
          %135 = vsyncadd %s129, %s134
          %s136 = smul.addr %s21, 8
          %s137 = sadd.s32 %s22, %s136
          %s138 = smul.addr %s137, 128
          %s139 = scalar_lea.hbm %s0, %s138
          %s140 = sshll.u32 %s132, 4
          %s141 = int_to_ptr.vmem [resolvable:$true] %s140
          %146 = dma.hbm_to_vmem [thread:$0]  %s139, 512, %s141, %s129, 256, 128, 8
        $region24: #{tpu_custom_call.1} parent=19 // pred_fallthru
          _
      $region20: #{tpu_custom_call.1} parent=5 // pred_fallthru
        _
      %p147 = scmp.le.s32.totalorder 1, %s14
      %p148 = scmp.lt.s32.totalorder %s14, 5
      %p149 = pnand %p147, %p148
      %p150 = pneg %p149
      // Predicated region
      $region25: #{tpu_custom_call.1} parent=5 // pred_check
        _
      $region26: #{tpu_custom_call.1} parent=5 // pred_check_branch
        %152 = sbr.rel (%p149) target = $region28
      $region27: #{tpu_custom_call.1} parent=5 // pred_region
        %s153 = ssub.s32 %s14, 1
        %s154 = sand.u32 %s41, 1
        %s155 = scalar_lea.sflag [#allocation3], %s154
        %s156 = sand.u32 %s41, 1
        %s157 = smul.addr %s156, 32
        %s158 = scalar_lea.vmem [#allocation2], %s157
        // Predicated region
        $region29: #{tpu_custom_call.1} parent=27 // pred_check
          %p159 = pneg %p54
        $region30: #{tpu_custom_call.1} parent=27 // pred_check_branch
          %161 = sbr.rel (%p159) target = $region32
        $region31: #{tpu_custom_call.1} parent=27 // pred_region
          %162 = dma.done %s155, 512
        $region32: #{tpu_custom_call.1} parent=27 // pred_fallthru
          _
        %s163 = sand.u32 %s41, 1
        %s164 = scalar_lea.sflag [#allocation3], %s163
        %s165 = sand.u32 %s41, 1
        %s166 = smul.addr %s165, 32
        %s167 = scalar_lea.vmem [#allocation2], %s166
        %p168 = pneg %p54
        %p169 = pneg %p51
        %p170 = pneg %p75
        %p171 = pneg %p72
        %p172 = pneg %p103
        %p173 = pneg %p100
        %s174 = sand.u32 %s90, 1
        %s175 = scalar_lea.sflag [#allocation4], %s174
        %s176 = sand.u32 %s90, 1
        %s177 = smul.addr %s176, 32
        %s178 = scalar_lea.vmem [#allocation5], %s177
        %v179 = vld [vmem:[%s158] sm:$0xff]
        %v180 = vld [vmem:[%s158 + $0x8] sm:$0xff]
        %v181 = vld [vmem:[%s158 + $0x10] sm:$0xff]
        %v182 = vld [vmem:[%s158 + $0x18] sm:$0xff]
        %v183 = vadd.f32 %v179, %v180
        %v184 = vadd.f32 %v183, %v181
        %v185 = vadd.f32 %v184, %v182
        %v186 = vrot.slane %v185, 4
        %v187 = vadd.f32 %v185, %v186
        %v188 = vrot.slane %v187, 2
        %v189 = vadd.f32 %v187, %v188
        %v190 = vrot.slane %v189, 1
        %v191 = vadd.f32 %v189, %v190
        %v192 = vmul.f32 %v179, %v179
        %v193 = vmul.f32 %v180, %v180
        %v194 = vmul.f32 %v181, %v181
        %v195 = vmul.f32 %v182, %v182
        %v196 = vadd.f32 %v192, %v193
        %v197 = vadd.f32 %v196, %v194
        %v198 = vadd.f32 %v197, %v195
        %v199 = vrot.slane %v198, 4
        %v200 = vadd.f32 %v198, %v199
        %v201 = vrot.slane %v200, 2
        %v202 = vadd.f32 %v200, %v201
        %v203 = vrot.slane %v202, 1
        %v204 = vadd.f32 %v202, %v203
        %v205 = vmul.f32 %v191, 0.03125
        %v206 = vmul.f32 %v204, 0.03125
        %v207 = vmul.f32 %v205, %v205
        %v208 = vsub.f32 %v206, %v207
        %v209 = vmax.f32 %v208, 0.0
        %v210 = vadd.f32 %v209, 1e-05
        %v211 = vrsqrt.pop %v210
        %v212 = vmul.f32 %v179, %v211
        %v213 = vmul.f32 %v180, %v211
        %v214 = vmul.f32 %v181, %v211
        %v215 = vmul.f32 %v182, %v211
        %v216 = vld [vmem:[%s1] sm:$0xff]
        %v217 = vld [vmem:[%s1 + $0x8] sm:$0xff]
        %v218 = vld [vmem:[%s1 + $0x10] sm:$0xff]
        %v219 = vld [vmem:[%s1 + $0x18] sm:$0xff]
        %221 = vset.pattern.permute.xlu0 0
        %222 = vperm.xlu0 %221, %v216
        %v223 = vpop.permute.xlu0 %222
        %226 = vset.pattern.permute.xlu0 0
        %227 = vperm.xlu0 %226, %v217
        %v228 = vpop.permute.xlu0 %227
        %231 = vset.pattern.permute.xlu0 0
        %232 = vperm.xlu0 %231, %v218
        %v233 = vpop.permute.xlu0 %232
        %236 = vset.pattern.permute.xlu0 0
        %237 = vperm.xlu0 %236, %v219
        %v238 = vpop.permute.xlu0 %237
        %v240 = vmul.f32 %v212, %v223
        %v241 = vmul.f32 %v213, %v228
        %v242 = vmul.f32 %v214, %v233
        %v243 = vmul.f32 %v215, %v238
        %244 = vst [vmem:[%s178] sm:$0xff] %v240
        %245 = vst [vmem:[%s178 + $0x8] sm:$0xff] %v241
        %246 = vst [vmem:[%s178 + $0x10] sm:$0xff] %v242
        %247 = vst [vmem:[%s178 + $0x18] sm:$0xff] %v243
        %s248 = sand.u32 %s90, 1
        %s249 = scalar_lea.sflag [#allocation4], %s248
        %s250 = sand.u32 %s90, 1
        %s251 = smul.addr %s250, 32
        %s252 = scalar_lea.vmem [#allocation5], %s251
        // Predicated region
        $region33: #{tpu_custom_call.1} parent=27 // pred_check
          %p253 = pneg %p100
        $region34: #{tpu_custom_call.1} parent=27 // pred_check_branch
          %255 = sbr.rel (%p253) target = $region36
        $region35: #{tpu_custom_call.1} parent=27 // pred_region
          %s257 = ssub.s32 512, 512
          %258 = vsyncadd %s249, %s257
          %s259 = smul.addr %s23, 8
          %s260 = sadd.s32 %s24, %s259
          %s261 = smul.addr %s260, 128
          %s262 = scalar_lea.hbm %s2, %s261
          %s263 = sshll.u32 %s252, 4
          %s264 = int_to_ptr.vmem [resolvable:$true] %s263
          %269 = dma.vmem_to_hbm [thread:$0]  %s264, 512, %s262, %s249, 128, 256, 8
        $region36: #{tpu_custom_call.1} parent=27 // pred_fallthru
          _
      $region28: #{tpu_custom_call.1} parent=5 // pred_fallthru
        _
      %p270 = scmp.le.s32.totalorder 2, %s14
      // Predicated region
      $region37: #{tpu_custom_call.1} parent=5 // pred_check
        %p271 = pneg %p270
      $region38: #{tpu_custom_call.1} parent=5 // pred_check_branch
        %273 = sbr.rel (%p271) target = $region40
      $region39: #{tpu_custom_call.1} parent=5 // pred_region
        %s274 = ssub.s32 %s14, 2
        // Predicated region
        $region41: #{tpu_custom_call.1} parent=39 // pred_check
          %p275 = pneg %p106
        $region42: #{tpu_custom_call.1} parent=39 // pred_check_branch
          %277 = sbr.rel (%p275) target = $region44
        $region43: #{tpu_custom_call.1} parent=39 // pred_region
          %s278 = sand.u32 %s91, 1
          %s279 = scalar_lea.sflag [#allocation4], %s278
          %s280 = sand.u32 %s91, 1
          %s281 = smul.addr %s280, 32
          %s282 = scalar_lea.vmem [#allocation5], %s281
          %283 = dma.done %s279, 512
        $region44: #{tpu_custom_call.1} parent=39 // pred_fallthru
          _
      $region40: #{tpu_custom_call.1} parent=5 // pred_fallthru
        _
    $region6: #{tpu_custom_call.1} parent=1 // loop_footer
      %s18 = sadd.s32 1, %s14
    $region7: #{tpu_custom_call.1} parent=1 // loop_footer_branch
      %13 = sbr.rel target = $region3
    $region8: #{tpu_custom_call.1} parent=1 // loop_exit
      _
    %284 = vsyncpa [#allocation3], 1
    %s285 = scalar_lea.sflag [#allocation3], 1
    %286 = vsyncpa %s285, 1
    %287 = vsyncpa [#allocation4], 1
    %s288 = scalar_lea.sflag [#allocation4], 1
    %289 = vsyncpa %s288, 1

</llo_original>
